<compile_context>
chip_gen: v7x
topology: tpu7x:2x2x1
jax: 0.10.0
libtpu: 0.0.40
codegen_flags: <defaults>
</compile_context>

<pallas_src>
import functools

import jax
import jax.numpy as jnp
from jax.experimental import pallas as pl
from jax.experimental.pallas import tpu as pltpu

IN_FEATS = 25          # 5 x 5 observation, flattened
HID = 64
OUT_FEATS = 5
OUT_PAD = 8            # 5 -> 8: tiny contiguous writeback (was 128)

# Single-buffer the resident weight/bias blocks (they are fetched exactly once).
_SINGLE_BUFFER = (
    {"pipeline_mode": pl.Buffered(1)} if hasattr(pl, "Buffered") else {}
)


def _round_up(n, m):
    return ((n + m - 1) // m) * m


def qnet_kernel(x_ref, w1_ref, b1_ref, w2_ref, b2_ref, w3_ref, b3_ref, o_ref):
    # Linear(25->64) + ReLU    (x tile is (TB, 25))
    h = jnp.dot(x_ref[...], w1_ref[...], preferred_element_type=jnp.float32)
    h = jnp.maximum(h + b1_ref[...], 0.0)
    # Linear(64->64) + ReLU
    h = jnp.dot(h, w2_ref[...], preferred_element_type=jnp.float32)
    h = jnp.maximum(h + b2_ref[...], 0.0)
    # Linear(64->5), zero-padded to 8 output columns (cols 5..7 are zero weights)
    q = jnp.dot(h, w3_ref[...], preferred_element_type=jnp.float32)
    o_ref[...] = (q + b3_ref[...]).astype(o_ref.dtype)


@functools.partial(jax.jit, static_argnames=("tb_max",))
def qnetwork_forward(x, params, *, tb_max=4096):
    """x: (B, 5, 5) or (B, 25) float32. Returns (B, 5) q-values."""
    B = x.shape[0]
    x_flat = x.reshape(B, -1).astype(jnp.float32)        # nn.Flatten(start_dim=1)
    assert x_flat.shape[1] == IN_FEATS
    w1, b1, w2, b2, w3, b3 = params

    # Batch tile: always a multiple of 8 sublanes; at most ceil(B/2) (rounded
    # up to 8) so big batches give >= 2 grid steps for v7x megacore sharding;
    # capped by tb_max so the double-buffered tiles stay well under the scoped
    # VMEM limit on every generation (~1.5 MiB total at TB=4096).
    tb_cap = max(8, (tb_max // 8) * 8)
    TB = min(tb_cap, _round_up(pl.cdiv(B, 2), 8))
    grid = (pl.cdiv(B, TB),)
    n_rows = grid[0] * TB                                 # rows actually computed

    # Zero-pad only the tiny last-layer weight/bias (numerically exact); the
    # activations go straight into the kernel un-padded.
    w3_p = jnp.pad(w3, ((0, 0), (0, OUT_PAD - OUT_FEATS)))        # (64, 8)
    b3_p = jnp.pad(b3, ((0, 0), (0, OUT_PAD - OUT_FEATS)))        # (1, 8)

    def const(shape):                                     # weights resident in VMEM
        return pl.BlockSpec(shape, lambda i: (0, 0), **_SINGLE_BUFFER)

    flops = 2 * n_rows * (IN_FEATS * HID + HID * HID + HID * OUT_PAD)
    bytes_accessed = 4 * (B * IN_FEATS + B * OUT_PAD
                          + IN_FEATS * HID + HID * HID + HID * OUT_PAD
                          + 2 * HID + OUT_PAD)

    out = pl.pallas_call(
        qnet_kernel,
        out_shape=jax.ShapeDtypeStruct((B, OUT_PAD), jnp.float32),
        grid=grid,
        in_specs=[
            pl.BlockSpec((TB, IN_FEATS), lambda i: (i, 0)),   # x: streamed per step
            const(w1.shape), const(b1.shape),
            const(w2.shape), const(b2.shape),
            const(w3_p.shape), const(b3_p.shape),
        ],
        out_specs=pl.BlockSpec((TB, OUT_PAD), lambda i: (i, 0)),
        compiler_params=pltpu.CompilerParams(
            dimension_semantics=("parallel",),                # megacore on v7x
        ),
        cost_estimate=pl.CostEstimate(
            flops=flops, transcendentals=0, bytes_accessed=bytes_accessed),
    )(x_flat, w1, b1, w2, b2, w3_p, b3_p)

    return out[:, :OUT_FEATS]


def init_params(key):
    """Deterministic init matching PyTorch nn.Linear shapes.

    PyTorch stores weight as (out, in); we store the transpose (in, out) so the
    kernel computes x @ W. Values follow a uniform(-1/sqrt(in), 1/sqrt(in))
    scheme like torch's default, seeded deterministically.
    """
    dims = [(IN_FEATS, HID), (HID, HID), (HID, OUT_FEATS)]
    params = []
    for (fan_in, fan_out) in dims:
        key, kw, kb = jax.random.split(key, 3)
        bound = 1.0 / jnp.sqrt(jnp.float32(fan_in))
        w = jax.random.uniform(kw, (fan_in, fan_out), jnp.float32, -bound, bound)
        b = jax.random.uniform(kb, (1, fan_out), jnp.float32, -bound, bound)
        params += [w, b]
    return tuple(params)


def reference_forward(x, params):
    w1, b1, w2, b2, w3, b3 = params
    h = x.reshape(x.shape[0], -1)
    h = jnp.maximum(h @ w1 + b1, 0.0)
    h = jnp.maximum(h @ w2 + b2, 0.0)
    return h @ w3 + b3


if __name__ == "__main__":
    key = jax.random.PRNGKey(0)
    params = init_params(jax.random.PRNGKey(0))

    # Small batch of 5x5 observations -> flattened feature dim 25.
    key, kx = jax.random.split(key)
    x = jax.random.normal(kx, (2, 5, 5), jnp.float32)
    q = jax.block_until_ready(qnetwork_forward(x, params))
    q_ref = reference_forward(x, params)
    assert q.shape == (2, OUT_FEATS)
    assert jnp.allclose(q, q_ref, atol=1e-4, rtol=1e-4)

    # Multi-step grid + ragged last tile (TB=8, grid=3, rows 16..23 overhang).
    key, kx2 = jax.random.split(key)
    x2 = jax.random.normal(kx2, (20, 5, 5), jnp.float32)
    q2 = jax.block_until_ready(qnetwork_forward(x2, params, tb_max=8))
    q2_ref = reference_forward(x2, params)
    assert q2.shape == (20, OUT_FEATS)
    assert jnp.allclose(q2, q2_ref, atol=1e-4, rtol=1e-4)

    # Default tile path with an odd batch: TB=ceil(37/2)->24, grid=2 (v7x path).
    key, kx3 = jax.random.split(key)
    x3 = jax.random.normal(kx3, (37, 5, 5), jnp.float32)
    q3 = jax.block_until_ready(qnetwork_forward(x3, params))
    q3_ref = reference_forward(x3, params)
    assert q3.shape == (37, OUT_FEATS)
    assert jnp.allclose(q3, q3_ref, atol=1e-4, rtol=1e-4)

    print("KERNEL_OK")
</pallas_src>

<mosaic_0001>
module attributes {stable_mosaic.version = 11 : i64} {
  func.func @qnet_kernel(%arg0: i32, %arg1: memref<8x25xf32, #tpu.memory_space<vmem>>, %arg2: memref<25x64xf32, #tpu.memory_space<vmem>>, %arg3: memref<1x64xf32, #tpu.memory_space<vmem>>, %arg4: memref<64x64xf32, #tpu.memory_space<vmem>>, %arg5: memref<1x64xf32, #tpu.memory_space<vmem>>, %arg6: memref<64x8xf32, #tpu.memory_space<vmem>>, %arg7: memref<1x8xf32, #tpu.memory_space<vmem>>, %arg8: memref<8x8xf32, #tpu.memory_space<vmem>>) attributes {dimension_semantics = [#tpu.dimension_semantics<parallel>], iteration_bounds = array<i64: 1>, scalar_prefetch = 0 : i64, scratch_operands = 0 : i64, tpu.core_type = #tpu.core_type<tc>, window_params = [{transform_indices = @transform_0, window_bounds = array<i64: 8, 25>}, {pipeline_mode = #tpu.pipeline_mode<synchronous>, transform_indices = @transform_1, window_bounds = array<i64: 25, 64>}, {pipeline_mode = #tpu.pipeline_mode<synchronous>, transform_indices = @transform_2, window_bounds = array<i64: 1, 64>}, {pipeline_mode = #tpu.pipeline_mode<synchronous>, transform_indices = @transform_3, window_bounds = array<i64: 64, 64>}, {pipeline_mode = #tpu.pipeline_mode<synchronous>, transform_indices = @transform_4, window_bounds = array<i64: 1, 64>}, {pipeline_mode = #tpu.pipeline_mode<synchronous>, transform_indices = @transform_5, window_bounds = array<i64: 64, 8>}, {pipeline_mode = #tpu.pipeline_mode<synchronous>, transform_indices = @transform_6, window_bounds = array<i64: 1, 8>}, {transform_indices = @transform_7, window_bounds = array<i64: 8, 8>}]} {
    %c0 = arith.constant 0 : index
    %c0_0 = arith.constant 0 : index
    %0 = vector.load %arg1[%c0, %c0_0] : memref<8x25xf32, #tpu.memory_space<vmem>>, vector<8x25xf32>
    %c0_1 = arith.constant 0 : index
    %c0_2 = arith.constant 0 : index
    %1 = vector.load %arg2[%c0_1, %c0_2] : memref<25x64xf32, #tpu.memory_space<vmem>>, vector<25x64xf32>
    %cst = arith.constant dense<0.000000e+00> : vector<8x64xf32>
    %2 = tpu.matmul %0, %1, %cst {dimension_numbers = #tpu.dot_dimension_numbers<[1], [0], [0], [1], [0, 0, 1, 1], [], []>} : vector<8x25xf32>, vector<25x64xf32>, vector<8x64xf32> -> vector<8x64xf32>
    %c0_3 = arith.constant 0 : index
    %c0_4 = arith.constant 0 : index
    %3 = vector.load %arg3[%c0_3, %c0_4] : memref<1x64xf32, #tpu.memory_space<vmem>>, vector<1x64xf32>
    %4 = vector.broadcast %3 : vector<1x64xf32> to vector<8x64xf32>
    %5 = arith.addf %2, %4 : vector<8x64xf32>
    %cst_5 = arith.constant 0.000000e+00 : f32
    %6 = vector.broadcast %cst_5 : f32 to vector<8x64xf32>
    %7 = arith.maximumf %5, %6 : vector<8x64xf32>
    %c0_6 = arith.constant 0 : index
    %c0_7 = arith.constant 0 : index
    %8 = vector.load %arg4[%c0_6, %c0_7] : memref<64x64xf32, #tpu.memory_space<vmem>>, vector<64x64xf32>
    %cst_8 = arith.constant dense<0.000000e+00> : vector<8x64xf32>
    %9 = tpu.matmul %7, %8, %cst_8 {dimension_numbers = #tpu.dot_dimension_numbers<[1], [0], [0], [1], [0, 0, 1, 1], [], []>} : vector<8x64xf32>, vector<64x64xf32>, vector<8x64xf32> -> vector<8x64xf32>
    %c0_9 = arith.constant 0 : index
    %c0_10 = arith.constant 0 : index
    %10 = vector.load %arg5[%c0_9, %c0_10] : memref<1x64xf32, #tpu.memory_space<vmem>>, vector<1x64xf32>
    %11 = vector.broadcast %10 : vector<1x64xf32> to vector<8x64xf32>
    %12 = arith.addf %9, %11 : vector<8x64xf32>
    %cst_11 = arith.constant 0.000000e+00 : f32
    %13 = vector.broadcast %cst_11 : f32 to vector<8x64xf32>
    %14 = arith.maximumf %12, %13 : vector<8x64xf32>
    %c0_12 = arith.constant 0 : index
    %c0_13 = arith.constant 0 : index
    %15 = vector.load %arg6[%c0_12, %c0_13] : memref<64x8xf32, #tpu.memory_space<vmem>>, vector<64x8xf32>
    %cst_14 = arith.constant dense<0.000000e+00> : vector<8x8xf32>
    %16 = tpu.matmul %14, %15, %cst_14 {dimension_numbers = #tpu.dot_dimension_numbers<[1], [0], [0], [1], [0, 0, 1, 1], [], []>} : vector<8x64xf32>, vector<64x8xf32>, vector<8x8xf32> -> vector<8x8xf32>
    %c0_15 = arith.constant 0 : index
    %c0_16 = arith.constant 0 : index
    %17 = vector.load %arg7[%c0_15, %c0_16] : memref<1x8xf32, #tpu.memory_space<vmem>>, vector<1x8xf32>
    %18 = vector.broadcast %17 : vector<1x8xf32> to vector<8x8xf32>
    %19 = arith.addf %16, %18 : vector<8x8xf32>
    %c0_17 = arith.constant 0 : index
    %c0_18 = arith.constant 0 : index
    %20 = vector.load %arg8[%c0_17, %c0_18] : memref<8x8xf32, #tpu.memory_space<vmem>>, vector<8x8xf32>
    tpu.vector_store %arg8[%c0_17, %c0_18], %19 {strides = array<i32>} : memref<8x8xf32, #tpu.memory_space<vmem>>, vector<8x8xf32>,
    return
  }
  func.func @transform_0(%arg0: i32) -> (i32, i32) {
    %c0_i32 = arith.constant 0 : i32
    %c0_i32_0 = arith.constant 0 : i32
    return %arg0, %c0_i32 : i32, i32
  }
  func.func @transform_1(%arg0: i32) -> (i32, i32) {
    %c0_i32 = arith.constant 0 : i32
    %c0_i32_0 = arith.constant 0 : i32
    %c0_i32_1 = arith.constant 0 : i32
    return %c0_i32, %c0_i32_0 : i32, i32
  }
  func.func @transform_2(%arg0: i32) -> (i32, i32) {
    %c0_i32 = arith.constant 0 : i32
    %c0_i32_0 = arith.constant 0 : i32
    %c0_i32_1 = arith.constant 0 : i32
    return %c0_i32, %c0_i32_0 : i32, i32
  }
  func.func @transform_3(%arg0: i32) -> (i32, i32) {
    %c0_i32 = arith.constant 0 : i32
    %c0_i32_0 = arith.constant 0 : i32
    %c0_i32_1 = arith.constant 0 : i32
    return %c0_i32, %c0_i32_0 : i32, i32
  }
  func.func @transform_4(%arg0: i32) -> (i32, i32) {
    %c0_i32 = arith.constant 0 : i32
    %c0_i32_0 = arith.constant 0 : i32
    %c0_i32_1 = arith.constant 0 : i32
    return %c0_i32, %c0_i32_0 : i32, i32
  }
  func.func @transform_5(%arg0: i32) -> (i32, i32) {
    %c0_i32 = arith.constant 0 : i32
    %c0_i32_0 = arith.constant 0 : i32
    %c0_i32_1 = arith.constant 0 : i32
    return %c0_i32, %c0_i32_0 : i32, i32
  }
  func.func @transform_6(%arg0: i32) -> (i32, i32) {
    %c0_i32 = arith.constant 0 : i32
    %c0_i32_0 = arith.constant 0 : i32
    %c0_i32_1 = arith.constant 0 : i32
    return %c0_i32, %c0_i32_0 : i32, i32
  }
  func.func @transform_7(%arg0: i32) -> (i32, i32) {
    %c0_i32 = arith.constant 0 : i32
    %c0_i32_0 = arith.constant 0 : i32
    return %arg0, %c0_i32 : i32, i32
  }
}

</mosaic_0001>

<llo_original>
// kernel: qnetwork_forward.1
$region0: #{qnetwork_forward.1}
  #allocation0 [shape = 'u32[]', space=smem, size = 0x4, offset = 0x4, fixed_abs, tag = 'smem constant byte address 0x4 - core index']
  #allocation1 [shape = 'u32[144,128]{1,0:T(1,128)}', space=vmem, size = 0x12000, scoped, tag = 'internal scratch']
  %s0 = inlined_call_operand.vmem [shape: f32[2,25], index: 0, kind: input, shape index: {}]
  %s1 = inlined_call_operand.vmem [shape: f32[25,64], index: 1, kind: input, shape index: {}]
  %s2 = inlined_call_operand.vmem [shape: f32[1,64], index: 2, kind: input, shape index: {}]
  %s3 = inlined_call_operand.vmem [shape: f32[64,64], index: 3, kind: input, shape index: {}]
  %s4 = inlined_call_operand.vmem [shape: f32[1,64], index: 4, kind: input, shape index: {}]
  %s5 = inlined_call_operand.vmem [shape: f32[64,8], index: 5, kind: input, shape index: {}]
  %s6 = inlined_call_operand.vmem [shape: f32[1,8], index: 6, kind: input, shape index: {}]
  %s7 = inlined_call_operand.hbm [shape: f32[2,8], index: 7, kind: output, shape index: {}]
  %s8 = sld [smem:[#allocation0]]
  $region38: #{qnetwork_forward.1} parent=0
    _
  %s10 = ssub.s32 1, %s8
  %s11 = scalar_select 0, %s10, %s8
  $region1: #{qnetwork_forward.1} parent=0
    #allocation2 [shape = 'u8[4096]{0}', space=vmem, size = 0x1000, scoped, tag = 'output window, operand 0, single buffered']
    #allocation3 [shape = 's32[1]{0}', space=sflag, size = 0x4, scoped, tag = 'scoped memory for qnetwork_forward.1']
    %12 = vsyncpa [#allocation3], 0
    // Predicated region
    $region2: #{qnetwork_forward.1} parent=1 // pred_check
      _
    $region3: #{qnetwork_forward.1} parent=1 // pred_check_branch
      %14 = sbr.rel (0) target = $region5
    $region4: #{qnetwork_forward.1} parent=1 // pred_region
      _
    $region5: #{qnetwork_forward.1} parent=1 // pred_fallthru
      _
    // Predicated region
    $region6: #{qnetwork_forward.1} parent=1 // pred_check
      _
    $region7: #{qnetwork_forward.1} parent=1 // pred_check_branch
      %16 = sbr.rel (0) target = $region9
    $region8: #{qnetwork_forward.1} parent=1 // pred_region
      _
    $region9: #{qnetwork_forward.1} parent=1 // pred_fallthru
      _
    // Predicated region
    $region10: #{qnetwork_forward.1} parent=1 // pred_check
      _
    $region11: #{qnetwork_forward.1} parent=1 // pred_check_branch
      %18 = sbr.rel (0) target = $region13
    $region12: #{qnetwork_forward.1} parent=1 // pred_region
      _
    $region13: #{qnetwork_forward.1} parent=1 // pred_fallthru
      _
    // Predicated region
    $region14: #{qnetwork_forward.1} parent=1 // pred_check
      _
    $region15: #{qnetwork_forward.1} parent=1 // pred_check_branch
      %20 = sbr.rel (0) target = $region17
    $region16: #{qnetwork_forward.1} parent=1 // pred_region
      _
    $region17: #{qnetwork_forward.1} parent=1 // pred_fallthru
      _
    // Predicated region
    $region18: #{qnetwork_forward.1} parent=1 // pred_check
      _
    $region19: #{qnetwork_forward.1} parent=1 // pred_check_branch
      %22 = sbr.rel (0) target = $region21
    $region20: #{qnetwork_forward.1} parent=1 // pred_region
      _
    $region21: #{qnetwork_forward.1} parent=1 // pred_fallthru
      _
    // Predicated region
    $region22: #{qnetwork_forward.1} parent=1 // pred_check
      _
    $region23: #{qnetwork_forward.1} parent=1 // pred_check_branch
      %24 = sbr.rel (0) target = $region25
    $region24: #{qnetwork_forward.1} parent=1 // pred_region
      _
    $region25: #{qnetwork_forward.1} parent=1 // pred_fallthru
      _
    // Predicated region
    $region26: #{qnetwork_forward.1} parent=1 // pred_check
      _
    $region27: #{qnetwork_forward.1} parent=1 // pred_check_branch
      %26 = sbr.rel (0) target = $region29
    $region28: #{qnetwork_forward.1} parent=1 // pred_region
      _
    $region29: #{qnetwork_forward.1} parent=1 // pred_fallthru
      _
    %v27 = vld [vmem:[%s0] sm:$0xff]
    %v28 = vld [vmem:[%s1] sm:$0xff]
    %v29 = vld [vmem:[%s1 + $0x8] sm:$0xff]
    %v30 = vld [vmem:[%s1 + $0x10] sm:$0xff]
    %v31 = vld [vmem:[%s1 + $0x18] sm:$0x1]
    %v32 = vld [vmem:[%s2] sm:$0x1]
    %v34 = vlaneseq
    %v35 = vshrl.u32 %v34, 7
    %v36 = vsub.s32 0, %v35
    %v37 = vrot.slane %v32, %v36
    %vm39 = vcmask 203776
    %v41 = vsel %vm39, %v27, 0
    %vm43 = vcmask 1040384
    %v45 = vsel %vm43, %v31, 0
    %47 = vmatprep.subr.mxu0 0.0
    %48 = vmatpush1.msra.mxu0 %v28
    %49 = vmatprep.subr.mxu0 0.0
    %50 = vmatpush1.msra.mxu0 %v29
    %51 = vmatprep.subr.mxu0 0.0
    %52 = vmatpush1.msra.mxu0 %v30
    %53 = vmatprep.subr.mxu0 0.0
    %54 = vmatpush1.msra.mxu0 %v45
    %55 = vmatprep.subr.mxu0 0.0
    %56 = vmatpush1.msra.mxu0 0.0
    %57 = vmatprep.subr.mxu0 0.0
    %58 = vmatpush1.msra.mxu0 0.0
    %59 = vmatprep.subr.mxu0 0.0
    %60 = vmatpush1.msra.mxu0 0.0
    %61 = vmatprep.subr.mxu0 0.0
    %62 = vmatpush1.msra.mxu0 0.0
    %63 = vmatprep.subr.mxu0 0.0
    %64 = vmatpush1.msra.mxu0 0.0
    %65 = vmatprep.subr.mxu0 0.0
    %66 = vmatpush1.msra.mxu0 0.0
    %67 = vmatprep.subr.mxu0 0.0
    %68 = vmatpush1.msra.mxu0 0.0
    %69 = vmatprep.subr.mxu0 0.0
    %70 = vmatpush1.msra.mxu0 0.0
    %71 = vmatprep.subr.mxu0 0.0
    %72 = vmatpush1.msra.mxu0 0.0
    %73 = vmatprep.subr.mxu0 0.0
    %74 = vmatpush1.msra.mxu0 0.0
    %75 = vmatprep.subr.mxu0 0.0
    %76 = vmatpush1.msra.mxu0 0.0
    %77 = vmatprep.subr.mxu0 0.0
    %78 = vmatpush1.msra.mxu0 0.0
    %79 = vmatprep.subr.mxu0 0.0
    %80 = vmatpush1.msra.mxu0 0.0
    %81 = vmatprep.subr.mxu0 0.0
    %82 = vmatpush1.msra.mxu0 0.0
    %83 = vmatprep.subr.mxu0 0.0
    %84 = vmatpush1.msra.mxu0 0.0
    %85 = vmatprep.subr.mxu0 0.0
    %86 = vmatpush1.msra.mxu0 0.0
    %87 = vmatprep.subr.mxu0 0.0
    %88 = vmatpush1.msra.mxu0 0.0
    %89 = vmatprep.subr.mxu0 0.0
    %90 = vmatpush1.msra.mxu0 0.0
    %91 = vmatprep.subr.mxu0 0.0
    %92 = vmatpush1.msra.mxu0 0.0
    %93 = vmatprep.subr.mxu0 0.0
    %94 = vmatpush1.msra.mxu0 0.0
    %95 = vmatprep.subr.mxu0 0.0
    %96 = vmatpush1.msra.mxu0 0.0
    %97 = vmatprep.subr.mxu0 0.0
    %98 = vmatpush1.msra.mxu0 0.0
    %99 = vmatprep.subr.mxu0 0.0
    %100 = vmatpush1.msra.mxu0 0.0
    %101 = vmatprep.subr.mxu0 0.0
    %102 = vmatpush1.msra.mxu0 0.0
    %103 = vmatprep.subr.mxu0 0.0
    %104 = vmatpush1.msra.mxu0 0.0
    %105 = vmatprep.subr.mxu0 0.0
    %106 = vmatpush1.msra.mxu0 0.0
    %107 = vmatprep.subr.mxu0 0.0
    %108 = vmatpush1.msra.mxu0 0.0
    %109 = vmatprep.subr.mxu0 0.0
    %110 = vmatpush1.msra.mxu0 0.0
    %111 = vmatprep.mubr.f32.mxu0 0.0
    %112 = vmatmul.mubr.f32.gmra.mrb[0].mxu0 %v41
    %v113 = vpop.f32.mrb[0].mxu0
    %v114 = vadd.f32 %v37, %v113
    %v115 = vpop.f32.mrb[0].mxu0
    %116 = vdwg.mxu0
    %v117 = vmax.f32 %v114, 0.0
    %v118 = vld [vmem:[%s3] sm:$0xff]
    %v119 = vld [vmem:[%s3 + $0x8] sm:$0xff]
    %v120 = vld [vmem:[%s3 + $0x10] sm:$0xff]
    %v121 = vld [vmem:[%s3 + $0x18] sm:$0xff]
    %v122 = vld [vmem:[%s3 + $0x20] sm:$0xff]
    %v123 = vld [vmem:[%s3 + $0x28] sm:$0xff]
    %v124 = vld [vmem:[%s3 + $0x30] sm:$0xff]
    %v125 = vld [vmem:[%s3 + $0x38] sm:$0xff]
    %v126 = vld [vmem:[%s4] sm:$0x1]
    %v128 = vlaneseq
    %v129 = vshrl.u32 %v128, 7
    %v130 = vsub.s32 0, %v129
    %v131 = vrot.slane %v126, %v130
    %vm133 = vcmask 523264
    %v135 = vsel %vm133, %v117, 0
    %137 = vmatprep.subr.mxu0 0.0
    %138 = vmatpush1.msra.mxu0 %v118
    %139 = vmatprep.subr.mxu0 0.0
    %140 = vmatpush1.msra.mxu0 %v119
    %141 = vmatprep.subr.mxu0 0.0
    %142 = vmatpush1.msra.mxu0 %v120
    %143 = vmatprep.subr.mxu0 0.0
    %144 = vmatpush1.msra.mxu0 %v121
    %145 = vmatprep.subr.mxu0 0.0
    %146 = vmatpush1.msra.mxu0 %v122
    %147 = vmatprep.subr.mxu0 0.0
    %148 = vmatpush1.msra.mxu0 %v123
    %149 = vmatprep.subr.mxu0 0.0
    %150 = vmatpush1.msra.mxu0 %v124
    %151 = vmatprep.subr.mxu0 0.0
    %152 = vmatpush1.msra.mxu0 %v125
    %153 = vmatprep.subr.mxu0 0.0
    %154 = vmatpush1.msra.mxu0 0.0
    %155 = vmatprep.subr.mxu0 0.0
    %156 = vmatpush1.msra.mxu0 0.0
    %157 = vmatprep.subr.mxu0 0.0
    %158 = vmatpush1.msra.mxu0 0.0
    %159 = vmatprep.subr.mxu0 0.0
    %160 = vmatpush1.msra.mxu0 0.0
    %161 = vmatprep.subr.mxu0 0.0
    %162 = vmatpush1.msra.mxu0 0.0
    %163 = vmatprep.subr.mxu0 0.0
    %164 = vmatpush1.msra.mxu0 0.0
    %165 = vmatprep.subr.mxu0 0.0
    %166 = vmatpush1.msra.mxu0 0.0
    %167 = vmatprep.subr.mxu0 0.0
    %168 = vmatpush1.msra.mxu0 0.0
    %169 = vmatprep.subr.mxu0 0.0
    %170 = vmatpush1.msra.mxu0 0.0
    %171 = vmatprep.subr.mxu0 0.0
    %172 = vmatpush1.msra.mxu0 0.0
    %173 = vmatprep.subr.mxu0 0.0
    %174 = vmatpush1.msra.mxu0 0.0
    %175 = vmatprep.subr.mxu0 0.0
    %176 = vmatpush1.msra.mxu0 0.0
    %177 = vmatprep.subr.mxu0 0.0
    %178 = vmatpush1.msra.mxu0 0.0
    %179 = vmatprep.subr.mxu0 0.0
    %180 = vmatpush1.msra.mxu0 0.0
    %181 = vmatprep.subr.mxu0 0.0
    %182 = vmatpush1.msra.mxu0 0.0
    %183 = vmatprep.subr.mxu0 0.0
    %184 = vmatpush1.msra.mxu0 0.0
    %185 = vmatprep.subr.mxu0 0.0
    %186 = vmatpush1.msra.mxu0 0.0
    %187 = vmatprep.subr.mxu0 0.0
    %188 = vmatpush1.msra.mxu0 0.0
    %189 = vmatprep.subr.mxu0 0.0
    %190 = vmatpush1.msra.mxu0 0.0
    %191 = vmatprep.subr.mxu0 0.0
    %192 = vmatpush1.msra.mxu0 0.0
    %193 = vmatprep.subr.mxu0 0.0
    %194 = vmatpush1.msra.mxu0 0.0
    %195 = vmatprep.subr.mxu0 0.0
    %196 = vmatpush1.msra.mxu0 0.0
    %197 = vmatprep.subr.mxu0 0.0
    %198 = vmatpush1.msra.mxu0 0.0
    %199 = vmatprep.subr.mxu0 0.0
    %200 = vmatpush1.msra.mxu0 0.0
    %201 = vmatprep.mubr.f32.mxu0 0.0
    %202 = vmatmul.mubr.f32.gmra.mrb[0].mxu0 %v135
    %v203 = vpop.f32.mrb[0].mxu0
    %v204 = vadd.f32 %v131, %v203
    %v205 = vpop.f32.mrb[0].mxu0
    %206 = vdwg.mxu0
    %v207 = vmax.f32 %v204, 0.0
    %v208 = vld [vmem:[%s5] sm:$0xff]
    %v209 = vld [vmem:[%s5 + $0x8] sm:$0xff]
    %v210 = vld [vmem:[%s5 + $0x10] sm:$0xff]
    %v211 = vld [vmem:[%s5 + $0x18] sm:$0xff]
    %v212 = vld [vmem:[%s5 + $0x20] sm:$0xff]
    %v213 = vld [vmem:[%s5 + $0x28] sm:$0xff]
    %v214 = vld [vmem:[%s5 + $0x30] sm:$0xff]
    %v215 = vld [vmem:[%s5 + $0x38] sm:$0xff]
    %v216 = vld [vmem:[%s6] sm:$0x1]
    %v218 = vlaneseq
    %v219 = vshrl.u32 %v218, 7
    %v220 = vsub.s32 0, %v219
    %v221 = vrot.slane %v216, %v220
    %v224 = vsel %vm133, %v207, 0
    %226 = vmatprep.subr.mxu0 0.0
    %227 = vmatpush1.msra.mxu0 %v208
    %228 = vmatprep.subr.mxu0 0.0
    %229 = vmatpush1.msra.mxu0 %v209
    %230 = vmatprep.subr.mxu0 0.0
    %231 = vmatpush1.msra.mxu0 %v210
    %232 = vmatprep.subr.mxu0 0.0
    %233 = vmatpush1.msra.mxu0 %v211
    %234 = vmatprep.subr.mxu0 0.0
    %235 = vmatpush1.msra.mxu0 %v212
    %236 = vmatprep.subr.mxu0 0.0
    %237 = vmatpush1.msra.mxu0 %v213
    %238 = vmatprep.subr.mxu0 0.0
    %239 = vmatpush1.msra.mxu0 %v214
    %240 = vmatprep.subr.mxu0 0.0
    %241 = vmatpush1.msra.mxu0 %v215
    %242 = vmatprep.subr.mxu0 0.0
    %243 = vmatpush1.msra.mxu0 0.0
    %244 = vmatprep.subr.mxu0 0.0
    %245 = vmatpush1.msra.mxu0 0.0
    %246 = vmatprep.subr.mxu0 0.0
    %247 = vmatpush1.msra.mxu0 0.0
    %248 = vmatprep.subr.mxu0 0.0
    %249 = vmatpush1.msra.mxu0 0.0
    %250 = vmatprep.subr.mxu0 0.0
    %251 = vmatpush1.msra.mxu0 0.0
    %252 = vmatprep.subr.mxu0 0.0
    %253 = vmatpush1.msra.mxu0 0.0
    %254 = vmatprep.subr.mxu0 0.0
    %255 = vmatpush1.msra.mxu0 0.0
    %256 = vmatprep.subr.mxu0 0.0
    %257 = vmatpush1.msra.mxu0 0.0
    %258 = vmatprep.subr.mxu0 0.0
    %259 = vmatpush1.msra.mxu0 0.0
    %260 = vmatprep.subr.mxu0 0.0
    %261 = vmatpush1.msra.mxu0 0.0
    %262 = vmatprep.subr.mxu0 0.0
    %263 = vmatpush1.msra.mxu0 0.0
    %264 = vmatprep.subr.mxu0 0.0
    %265 = vmatpush1.msra.mxu0 0.0
    %266 = vmatprep.subr.mxu0 0.0
    %267 = vmatpush1.msra.mxu0 0.0
    %268 = vmatprep.subr.mxu0 0.0
    %269 = vmatpush1.msra.mxu0 0.0
    %270 = vmatprep.subr.mxu0 0.0
    %271 = vmatpush1.msra.mxu0 0.0
    %272 = vmatprep.subr.mxu0 0.0
    %273 = vmatpush1.msra.mxu0 0.0
    %274 = vmatprep.subr.mxu0 0.0
    %275 = vmatpush1.msra.mxu0 0.0
    %276 = vmatprep.subr.mxu0 0.0
    %277 = vmatpush1.msra.mxu0 0.0
    %278 = vmatprep.subr.mxu0 0.0
    %279 = vmatpush1.msra.mxu0 0.0
    %280 = vmatprep.subr.mxu0 0.0
    %281 = vmatpush1.msra.mxu0 0.0
    %282 = vmatprep.subr.mxu0 0.0
    %283 = vmatpush1.msra.mxu0 0.0
    %284 = vmatprep.subr.mxu0 0.0
    %285 = vmatpush1.msra.mxu0 0.0
    %286 = vmatprep.subr.mxu0 0.0
    %287 = vmatpush1.msra.mxu0 0.0
    %288 = vmatprep.subr.mxu0 0.0
    %289 = vmatpush1.msra.mxu0 0.0
    %290 = vmatprep.mubr.f32.mxu0 0.0
    %291 = vmatmul.mubr.f32.gmra.mrb[0].mxu0 %v224
    %v292 = vpop.f32.mrb[0].mxu0
    %v293 = vadd.f32 %v221, %v292
    %v294 = vpop.f32.mrb[0].mxu0
    %295 = vdwg.mxu0
    %vm296 = vcmask 64512
    %297 = vst.msk [vmem:[#allocation2] sm:$0xff] %vm296, %v293
    // Predicated region
    $region30: #{qnetwork_forward.1} parent=1 // pred_check
      _
    $region31: #{qnetwork_forward.1} parent=1 // pred_check_branch
      %299 = sbr.rel (0) target = $region33
    $region32: #{qnetwork_forward.1} parent=1 // pred_region
      %s301 = ssub.s32 128, 32
      %302 = vsyncadd [#allocation3], %s301
      %s303 = sshll.u32 [#allocation2], 4
      %s304 = int_to_ptr.vmem [resolvable:$true] %s303
      %309 = dma.vmem_to_hbm [thread:$0]  %s304, 32, %s7, [#allocation3], 32, 32, 2
    $region33: #{qnetwork_forward.1} parent=1 // pred_fallthru
      _
    // Predicated region
    $region34: #{qnetwork_forward.1} parent=1 // pred_check
      _
    $region35: #{qnetwork_forward.1} parent=1 // pred_check_branch
      %311 = sbr.rel (0) target = $region37
    $region36: #{qnetwork_forward.1} parent=1 // pred_region
      %312 = dma.done [#allocation3], 128
    $region37: #{qnetwork_forward.1} parent=1 // pred_fallthru
      _
    %313 = vsyncpa [#allocation3], 1

</llo_original>
